<compile_context>
chip_gen: v6e
topology: v6e:2x2x1
jax: 0.10.0
libtpu: 0.0.40
codegen_flags: <defaults>
</compile_context>

<pallas_src>
import jax
import jax.numpy as jnp
from jax.experimental import pallas as pl
from jax.experimental.pallas import tpu as pltpu

LANE = 128
NEG_SLOPE = 0.01                       # torch nn.LeakyReLU default
DIMS = (4, 25, 30, 50, 3)              # input, h1, h2, h3, output


def _leaky_relu(x, slope=NEG_SLOPE):
    return jnp.where(x > 0, x, slope * x)


def _log_sigmoid(x):
    # numerically stable: logsigmoid(x) = min(x, 0) - log1p(exp(-|x|))  (EUP ops)
    return jnp.minimum(x, 0.0) - jnp.log1p(jnp.exp(-jnp.abs(x)))


def mlp_kernel(x_ref, w1_ref, w_ref, b_ref, o_ref):
    # x_ref: (tb, f_in) true-width input; w1_ref: (f_in, 128);
    # w_ref: (3, 128, 128) stacked layers 2..4; b_ref: (4, 128) stacked biases.
    x = x_ref[...]

    h = jnp.dot(x, w1_ref[...], preferred_element_type=jnp.float32) + b_ref[0:1, :]
    h = _leaky_relu(h)

    h = jnp.dot(h, w_ref[0], preferred_element_type=jnp.float32) + b_ref[1:2, :]
    h = _log_sigmoid(h)

    h = jnp.dot(h, w_ref[1], preferred_element_type=jnp.float32) + b_ref[2:3, :]
    h = _leaky_relu(h)

    h = jnp.dot(h, w_ref[2], preferred_element_type=jnp.float32) + b_ref[3:4, :]

    o_ref[...] = h.astype(o_ref.dtype)


def _round_up(x, m):
    return ((x + m - 1) // m) * m


def _pad2d(a, rows, cols):
    return jnp.pad(a, ((0, rows - a.shape[0]), (0, cols - a.shape[1])))


def prepare_params(params):
    """One-time packing of params into lane-dense kernel operands (call once, reuse).

    Returns (w1_p, w_stack, b_stack):
      w1_p    (f_in, 128)   -- true input rows, output cols zero-padded to 128
      w_stack (3, 128, 128) -- layers 2..4, rows AND cols zero-padded
      b_stack (4, 128)      -- all biases zero-padded to 128 lanes
    Zero-padded weight ROWS cancel the logsigmoid(0) = -log(2) values that appear in
    padded hidden lanes after layer 2, so results are exact.
    """
    (w1, b1), (w2, b2), (w3, b3), (w4, b4) = params
    w1_p = _pad2d(w1, w1.shape[0], LANE)
    w_stack = jnp.stack([_pad2d(w, LANE, LANE) for w in (w2, w3, w4)])
    b_stack = jnp.stack(
        [jnp.pad(b.reshape(-1), (0, LANE - b.shape[-1])) for b in (b1, b2, b3, b4)]
    )
    return w1_p, w_stack, b_stack


def _choose_batch_tiling(B, block_batch):
    """Pick (tb, n_tiles) so waste is < 8 rows per tile (no up-to-tb-1 batch padding)."""
    b8 = _round_up(B, 8)
    if b8 <= block_batch:
        return b8, 1
    n_tiles = -(-b8 // block_batch)                 # cdiv
    tb = _round_up(-(-b8 // n_tiles), 8)            # rebalanced tile size
    return tb, n_tiles


def new_model_forward(x, padded_params, *, block_batch=1024, dims=DIMS):
    """x: (B, input_features) f32.  padded_params: output of prepare_params()."""
    w1_p, w_stack, b_stack = padded_params
    B, f_in = x.shape
    out_features = dims[-1]

    tb, n_tiles = _choose_batch_tiling(B, block_batch)
    b_pad = tb * n_tiles
    if b_pad != B:
        # Batch (sublane) padding only; the lane dim stays at its true width.
        x = jnp.pad(x, ((0, b_pad - B), (0, 0)))

    # Advisory cost estimate from TRUE dims (avoid scheduler distortion).
    true_flops = 2 * B * sum(dims[i] * dims[i + 1] for i in range(len(dims) - 1))
    true_bytes = 4 * (
        B * f_in
        + sum(dims[i] * dims[i + 1] + dims[i + 1] for i in range(len(dims) - 1))
        + B * out_features
    )

    # Tight-but-safe VMEM budget: resident weights + double-buffered x/out tiles, x4 margin.
    resident_bytes = 4 * (w1_p.size + w_stack.size + b_stack.size)
    stream_bytes = 2 * 4 * (tb * f_in + tb * LANE)
    vmem_limit = int(min(32 << 20, max(4 << 20, 4 * (resident_bytes + stream_bytes))))

    out_p = pl.pallas_call(
        mlp_kernel,
        out_shape=jax.ShapeDtypeStruct((b_pad, LANE), jnp.float32),
        grid_spec=pltpu.PrefetchScalarGridSpec(
            num_scalar_prefetch=0,
            grid=(n_tiles,),
            in_specs=[
                pl.BlockSpec((tb, f_in), lambda i: (i, 0)),          # streamed x tile
                pl.BlockSpec(w1_p.shape, lambda i: (0, 0)),          # resident
                pl.BlockSpec(w_stack.shape, lambda i: (0, 0, 0)),    # resident
                pl.BlockSpec(b_stack.shape, lambda i: (0, 0)),       # resident
            ],
            out_specs=pl.BlockSpec((tb, LANE), lambda i: (i, 0)),    # lane-dense store
        ),
        compiler_params=pltpu.CompilerParams(
            dimension_semantics=("parallel",),  # batch tiles shard across TCs on v7x
            vmem_limit_bytes=vmem_limit,
        ),
        cost_estimate=pl.CostEstimate(
            flops=true_flops,
            transcendentals=2 * B * dims[2],    # exp + log1p per logsigmoid element
            bytes_accessed=true_bytes,
        ),
    )(x, w1_p, w_stack, b_stack)

    # Strip batch + lane padding.
    return out_p[:B, :out_features]


def init_params(key, dims):
    """PyTorch-style uniform(-1/sqrt(fan_in), 1/sqrt(fan_in)) init, deterministic."""
    params = []
    for fan_in, fan_out in zip(dims[:-1], dims[1:]):
        key, kw, kb = jax.random.split(key, 3)
        bound = 1.0 / jnp.sqrt(fan_in)
        w = jax.random.uniform(kw, (fan_in, fan_out), jnp.float32, -bound, bound)
        b = jax.random.uniform(kb, (1, fan_out), jnp.float32, -bound, bound)
        params.append((w, b))
    return params


def reference_forward(x, params):
    h = x
    for i, (w, b) in enumerate(params):
        h = h @ w + b
        if i in (0, 2):
            h = _leaky_relu(h)
        elif i == 1:
            h = _log_sigmoid(h)
    return h


if __name__ == "__main__":
    key = jax.random.PRNGKey(0)
    k_x, k_p = jax.random.split(key)

    B, input_features = 8, 4
    dims = DIMS

    x = jax.random.normal(k_x, (B, input_features), jnp.float32)
    params = init_params(k_p, dims)

    # One-time weight packing/padding, hoisted out of the forward path.
    padded_params = prepare_params(params)
    fwd = jax.jit(new_model_forward)

    out = jax.block_until_ready(fwd(x, padded_params))

    ref = reference_forward(x, params)
    assert out.shape == (B, dims[-1]), out.shape
    assert jnp.allclose(out, ref, atol=1e-5, rtol=1e-5), "mismatch vs reference"

    print("KERNEL_OK")
</pallas_src>

<mosaic_0001>
module attributes {stable_mosaic.version = 11 : i64} {
  func.func @mlp_kernel(%arg0: i32, %arg1: memref<8x4xf32, #tpu.memory_space<vmem>>, %arg2: memref<4x128xf32, #tpu.memory_space<vmem>>, %arg3: memref<3x128x128xf32, #tpu.memory_space<vmem>>, %arg4: memref<4x128xf32, #tpu.memory_space<vmem>>, %arg5: memref<8x128xf32, #tpu.memory_space<vmem>>) attributes {dimension_semantics = [#tpu.dimension_semantics<parallel>], iteration_bounds = array<i64: 1>, scalar_prefetch = 0 : i64, scratch_operands = 0 : i64, tpu.core_type = #tpu.core_type<tc>, window_params = [{transform_indices = @transform_0, window_bounds = array<i64: 8, 4>}, {pipeline_mode = #tpu.pipeline_mode<synchronous>, transform_indices = @transform_1, window_bounds = array<i64: 4, 128>}, {pipeline_mode = #tpu.pipeline_mode<synchronous>, transform_indices = @transform_2, window_bounds = array<i64: 3, 128, 128>}, {pipeline_mode = #tpu.pipeline_mode<synchronous>, transform_indices = @transform_3, window_bounds = array<i64: 4, 128>}, {transform_indices = @transform_4, window_bounds = array<i64: 8, 128>}]} {
    %c0 = arith.constant 0 : index
    %c0_0 = arith.constant 0 : index
    %0 = vector.load %arg1[%c0, %c0_0] : memref<8x4xf32, #tpu.memory_space<vmem>>, vector<8x4xf32>
    %c0_1 = arith.constant 0 : index
    %c0_2 = arith.constant 0 : index
    %1 = vector.load %arg2[%c0_1, %c0_2] : memref<4x128xf32, #tpu.memory_space<vmem>>, vector<4x128xf32>
    %cst = arith.constant dense<0.000000e+00> : vector<8x128xf32>
    %2 = tpu.matmul %0, %1, %cst {dimension_numbers = #tpu.dot_dimension_numbers<[1], [0], [0], [1], [0, 0, 1, 1], [], []>} : vector<8x4xf32>, vector<4x128xf32>, vector<8x128xf32> -> vector<8x128xf32>
    %c0_3 = arith.constant 0 : index
    %c0_4 = arith.constant 0 : index
    %3 = vector.load %arg4[%c0_3, %c0_4] : memref<4x128xf32, #tpu.memory_space<vmem>>, vector<1x128xf32>
    %4 = vector.broadcast %3 : vector<1x128xf32> to vector<8x128xf32>
    %5 = arith.addf %2, %4 : vector<8x128xf32>
    %cst_5 = arith.constant 0.000000e+00 : f32
    %6 = vector.broadcast %cst_5 : f32 to vector<8x128xf32>
    %7 = arith.cmpf ogt, %5, %6 : vector<8x128xf32>
    %cst_6 = arith.constant 0.00999999977 : f32
    %8 = vector.broadcast %cst_6 : f32 to vector<8x128xf32>
    %9 = arith.mulf %8, %5 : vector<8x128xf32>
    %10 = arith.select %7, %5, %9 : vector<8x128xi1>, vector<8x128xf32>
    %c0_7 = arith.constant 0 : index
    %c0_8 = arith.constant 0 : index
    %c0_9 = arith.constant 0 : index
    %11 = vector.load %arg3[%c0_7, %c0_8, %c0_9] : memref<3x128x128xf32, #tpu.memory_space<vmem>>, vector<1x128x128xf32>
    %12 = vector.shape_cast %11 : vector<1x128x128xf32> to vector<128x128xf32>
    %cst_10 = arith.constant dense<0.000000e+00> : vector<8x128xf32>
    %13 = tpu.matmul %10, %12, %cst_10 {dimension_numbers = #tpu.dot_dimension_numbers<[1], [0], [0], [1], [0, 0, 1, 1], [], []>} : vector<8x128xf32>, vector<128x128xf32>, vector<8x128xf32> -> vector<8x128xf32>
    %c1 = arith.constant 1 : index
    %c0_11 = arith.constant 0 : index
    %14 = vector.load %arg4[%c1, %c0_11] : memref<4x128xf32, #tpu.memory_space<vmem>>, vector<1x128xf32>
    %15 = vector.broadcast %14 : vector<1x128xf32> to vector<8x128xf32>
    %16 = arith.addf %13, %15 : vector<8x128xf32>
    %cst_12 = arith.constant 0.000000e+00 : f32
    %17 = vector.broadcast %cst_12 : f32 to vector<8x128xf32>
    %18 = arith.minimumf %16, %17 : vector<8x128xf32>
    %19 = math.absf %16 : vector<8x128xf32>
    %cst_13 = arith.constant 0.000000e+00 : f32
    %20 = vector.broadcast %cst_13 : f32 to vector<8x128xf32>
    %21 = arith.subf %20, %19 : vector<8x128xf32>
    %22 = math.exp %21 : vector<8x128xf32>
    %23 = math.log1p %22 : vector<8x128xf32>
    %24 = arith.subf %18, %23 : vector<8x128xf32>
    %c1_14 = arith.constant 1 : index
    %c0_15 = arith.constant 0 : index
    %c0_16 = arith.constant 0 : index
    %25 = vector.load %arg3[%c1_14, %c0_15, %c0_16] : memref<3x128x128xf32, #tpu.memory_space<vmem>>, vector<1x128x128xf32>
    %26 = vector.shape_cast %25 : vector<1x128x128xf32> to vector<128x128xf32>
    %cst_17 = arith.constant dense<0.000000e+00> : vector<8x128xf32>
    %27 = tpu.matmul %24, %26, %cst_17 {dimension_numbers = #tpu.dot_dimension_numbers<[1], [0], [0], [1], [0, 0, 1, 1], [], []>} : vector<8x128xf32>, vector<128x128xf32>, vector<8x128xf32> -> vector<8x128xf32>
    %c2 = arith.constant 2 : index
    %c0_18 = arith.constant 0 : index
    %28 = vector.load %arg4[%c2, %c0_18] : memref<4x128xf32, #tpu.memory_space<vmem>>, vector<1x128xf32>
    %29 = vector.broadcast %28 : vector<1x128xf32> to vector<8x128xf32>
    %30 = arith.addf %27, %29 : vector<8x128xf32>
    %cst_19 = arith.constant 0.000000e+00 : f32
    %31 = vector.broadcast %cst_19 : f32 to vector<8x128xf32>
    %32 = arith.cmpf ogt, %30, %31 : vector<8x128xf32>
    %cst_20 = arith.constant 0.00999999977 : f32
    %33 = vector.broadcast %cst_20 : f32 to vector<8x128xf32>
    %34 = arith.mulf %33, %30 : vector<8x128xf32>
    %35 = arith.select %32, %30, %34 : vector<8x128xi1>, vector<8x128xf32>
    %c2_21 = arith.constant 2 : index
    %c0_22 = arith.constant 0 : index
    %c0_23 = arith.constant 0 : index
    %36 = vector.load %arg3[%c2_21, %c0_22, %c0_23] : memref<3x128x128xf32, #tpu.memory_space<vmem>>, vector<1x128x128xf32>
    %37 = vector.shape_cast %36 : vector<1x128x128xf32> to vector<128x128xf32>
    %cst_24 = arith.constant dense<0.000000e+00> : vector<8x128xf32>
    %38 = tpu.matmul %35, %37, %cst_24 {dimension_numbers = #tpu.dot_dimension_numbers<[1], [0], [0], [1], [0, 0, 1, 1], [], []>} : vector<8x128xf32>, vector<128x128xf32>, vector<8x128xf32> -> vector<8x128xf32>
    %c3 = arith.constant 3 : index
    %c0_25 = arith.constant 0 : index
    %39 = vector.load %arg4[%c3, %c0_25] : memref<4x128xf32, #tpu.memory_space<vmem>>, vector<1x128xf32>
    %40 = vector.broadcast %39 : vector<1x128xf32> to vector<8x128xf32>
    %41 = arith.addf %38, %40 : vector<8x128xf32>
    %c0_26 = arith.constant 0 : index
    %c0_27 = arith.constant 0 : index
    %42 = vector.load %arg5[%c0_26, %c0_27] : memref<8x128xf32, #tpu.memory_space<vmem>>, vector<8x128xf32>
    tpu.vector_store %arg5[%c0_26, %c0_27], %41 {strides = array<i32>} : memref<8x128xf32, #tpu.memory_space<vmem>>, vector<8x128xf32>,
    return
  }
  func.func @transform_0(%arg0: i32) -> (i32, i32) {
    %c0_i32 = arith.constant 0 : i32
    %c0_i32_0 = arith.constant 0 : i32
    return %arg0, %c0_i32 : i32, i32
  }
  func.func @transform_1(%arg0: i32) -> (i32, i32) {
    %c0_i32 = arith.constant 0 : i32
    %c0_i32_0 = arith.constant 0 : i32
    %c0_i32_1 = arith.constant 0 : i32
    return %c0_i32, %c0_i32_0 : i32, i32
  }
  func.func @transform_2(%arg0: i32) -> (i32, i32, i32) {
    %c0_i32 = arith.constant 0 : i32
    %c0_i32_0 = arith.constant 0 : i32
    %c0_i32_1 = arith.constant 0 : i32
    %c0_i32_2 = arith.constant 0 : i32
    return %c0_i32, %c0_i32_0, %c0_i32_1 : i32, i32, i32
  }
  func.func @transform_3(%arg0: i32) -> (i32, i32) {
    %c0_i32 = arith.constant 0 : i32
    %c0_i32_0 = arith.constant 0 : i32
    %c0_i32_1 = arith.constant 0 : i32
    return %c0_i32, %c0_i32_0 : i32, i32
  }
  func.func @transform_4(%arg0: i32) -> (i32, i32) {
    %c0_i32 = arith.constant 0 : i32
    %c0_i32_0 = arith.constant 0 : i32
    return %arg0, %c0_i32 : i32, i32
  }
}

</mosaic_0001>

<llo_original>
// kernel: new_model_forward.1
$region0: #{new_model_forward.1}
  #allocation0 [shape = 'u32[]', space=smem, size = 0x4, offset = 0x4, fixed_abs, tag = 'smem constant byte address 0x4 - core index']
  #allocation1 [shape = 'u32[144,128]{1,0:T(1,128)}', space=vmem, size = 0x12000, scoped, tag = 'internal scratch']
  %s0 = inlined_call_operand.vmem [shape: f32[8,4], index: 0, kind: input, shape index: {}]
  %s1 = inlined_call_operand.vmem [shape: f32[4,128], index: 1, kind: input, shape index: {}]
  %s2 = inlined_call_operand.hbm [shape: f32[3,128,128], index: 2, kind: input, shape index: {}]
  %s3 = inlined_call_operand.vmem [shape: f32[4,128], index: 3, kind: input, shape index: {}]
  %s4 = inlined_call_operand.vmem [shape: f32[8,128], index: 4, kind: output, shape index: {}]
  %s5 = sld [smem:[#allocation0]]
  $region30: #{new_model_forward.1} parent=0
    _
  %s7 = ssub.s32 1, %s5
  %s8 = scalar_select 0, %s7, %s5
  $region1: #{new_model_forward.1} parent=0
    #allocation2 [shape = 'u8[196608]{0}', space=vmem, size = 0x30000, scoped, tag = 'input window, operand 2, single buffered']
    #allocation3 [shape = 's32[1]{0}', space=sflag, size = 0x4, scoped, tag = 'scoped memory for new_model_forward.1']
    %9 = vsyncpa [#allocation3], 0
    // Predicated region
    $region2: #{new_model_forward.1} parent=1 // pred_check
      _
    $region3: #{new_model_forward.1} parent=1 // pred_check_branch
      %11 = sbr.rel (0) target = $region5
    $region4: #{new_model_forward.1} parent=1 // pred_region
      _
    $region5: #{new_model_forward.1} parent=1 // pred_fallthru
      _
    // Predicated region
    $region6: #{new_model_forward.1} parent=1 // pred_check
      _
    $region7: #{new_model_forward.1} parent=1 // pred_check_branch
      %13 = sbr.rel (0) target = $region9
    $region8: #{new_model_forward.1} parent=1 // pred_region
      _
    $region9: #{new_model_forward.1} parent=1 // pred_fallthru
      _
    // Predicated region
    $region10: #{new_model_forward.1} parent=1 // pred_check
      _
    $region11: #{new_model_forward.1} parent=1 // pred_check_branch
      %15 = sbr.rel (0) target = $region13
    $region12: #{new_model_forward.1} parent=1 // pred_region
      %s17 = ssub.s32 6144, 6144
      %18 = vsyncadd [#allocation3], %s17
      %s19 = sshll.u32 [#allocation2], 4
      %s20 = int_to_ptr.vmem [resolvable:$true] %s19
      %25 = dma.hbm_to_vmem [thread:$0]  %s2, 6144, %s20, [#allocation3], 128, 128, 8
    $region13: #{new_model_forward.1} parent=1 // pred_fallthru
      _
    // Predicated region
    $region14: #{new_model_forward.1} parent=1 // pred_check
      _
    $region15: #{new_model_forward.1} parent=1 // pred_check_branch
      %27 = sbr.rel (0) target = $region17
    $region16: #{new_model_forward.1} parent=1 // pred_region
      _
    $region17: #{new_model_forward.1} parent=1 // pred_fallthru
      _
    // Predicated region
    $region18: #{new_model_forward.1} parent=1 // pred_check
      _
    $region19: #{new_model_forward.1} parent=1 // pred_check_branch
      %29 = sbr.rel (0) target = $region21
    $region20: #{new_model_forward.1} parent=1 // pred_region
      %30 = dma.done [#allocation3], 6144
    $region21: #{new_model_forward.1} parent=1 // pred_fallthru
      _
    %v31 = vld [vmem:[%s0] sm:$0xff]
    %v32 = vld [vmem:[%s1] sm:$0xf]
    %v33 = vld [vmem:[%s3] sm:$0x1]
    %v34 = vlaneseq
    %v35 = vshrl.u32 %v34, 7
    %v36 = vsub.s32 0, %v35
    %v37 = vrot.slane %v33, %v36
    %vm38 = vcmask 31744
    %v40 = vsel %vm38, %v31, 0
    %vm42 = vcmask 1043456
    %v44 = vsel %vm42, %v32, 0
    %46 = vmatprep.subr.mxu0 0.0
    %47 = vmatpush1.msra.mxu0 0.0
    %48 = vmatprep.subr.mxu0 0.0
    %49 = vmatpush1.msra.mxu0 0.0
    %50 = vmatprep.subr.mxu0 0.0
    %51 = vmatpush1.msra.mxu0 0.0
    %52 = vmatprep.subr.mxu0 0.0
    %53 = vmatpush1.msra.mxu0 0.0
    %54 = vmatprep.subr.mxu0 0.0
    %55 = vmatpush1.msra.mxu0 0.0
    %56 = vmatprep.subr.mxu0 0.0
    %57 = vmatpush1.msra.mxu0 0.0
    %58 = vmatprep.subr.mxu0 0.0
    %59 = vmatpush1.msra.mxu0 0.0
    %60 = vmatprep.subr.mxu0 0.0
    %61 = vmatpush1.msra.mxu0 0.0
    %62 = vmatprep.subr.mxu0 0.0
    %63 = vmatpush1.msra.mxu0 0.0
    %64 = vmatprep.subr.mxu0 0.0
    %65 = vmatpush1.msra.mxu0 0.0
    %66 = vmatprep.subr.mxu0 0.0
    %67 = vmatpush1.msra.mxu0 0.0
    %68 = vmatprep.subr.mxu0 0.0
    %69 = vmatpush1.msra.mxu0 0.0
    %70 = vmatprep.subr.mxu0 0.0
    %71 = vmatpush1.msra.mxu0 0.0
    %72 = vmatprep.subr.mxu0 0.0
    %73 = vmatpush1.msra.mxu0 0.0
    %74 = vmatprep.subr.mxu0 0.0
    %75 = vmatpush1.msra.mxu0 0.0
    %76 = vmatprep.subr.mxu0 0.0
    %77 = vmatpush1.msra.mxu0 %v44
    %78 = vmatprep.subr.mxu0 0.0
    %79 = vmatpush2.msra.mxu0 0.0
    %80 = vmatprep.subr.mxu0 0.0
    %81 = vmatpush2.msra.mxu0 0.0
    %82 = vmatprep.subr.mxu0 0.0
    %83 = vmatpush2.msra.mxu0 0.0
    %84 = vmatprep.subr.mxu0 0.0
    %85 = vmatpush2.msra.mxu0 0.0
    %86 = vmatprep.subr.mxu0 0.0
    %87 = vmatpush2.msra.mxu0 0.0
    %88 = vmatprep.subr.mxu0 0.0
    %89 = vmatpush2.msra.mxu0 0.0
    %90 = vmatprep.subr.mxu0 0.0
    %91 = vmatpush2.msra.mxu0 0.0
    %92 = vmatprep.subr.mxu0 0.0
    %93 = vmatpush2.msra.mxu0 0.0
    %94 = vmatprep.subr.mxu0 0.0
    %95 = vmatpush2.msra.mxu0 0.0
    %96 = vmatprep.subr.mxu0 0.0
    %97 = vmatpush2.msra.mxu0 0.0
    %98 = vmatprep.subr.mxu0 0.0
    %99 = vmatpush2.msra.mxu0 0.0
    %100 = vmatprep.subr.mxu0 0.0
    %101 = vmatpush2.msra.mxu0 0.0
    %102 = vmatprep.subr.mxu0 0.0
    %103 = vmatpush2.msra.mxu0 0.0
    %104 = vmatprep.subr.mxu0 0.0
    %105 = vmatpush2.msra.mxu0 0.0
    %106 = vmatprep.subr.mxu0 0.0
    %107 = vmatpush2.msra.mxu0 0.0
    %108 = vmatprep.subr.mxu0 0.0
    %109 = vmatpush2.msra.mxu0 0.0
    %110 = vmatprep.mubr.f32.mxu0 0.0
    %111 = vmatmul.mubr.f32.gmra.mxu0 %v40
    %v112 = vpop.f32.mrf.mxu0
    %v113 = vadd.f32 %v37, %v112
    %v114 = vpop.f32.mrf.mxu0
    %115 = vdwg.mxu0
    %vm116 = vcmp.gt.f32.partialorder %v113, 0.0
    %v117 = vmul.f32 %v113, 0.01
    %v118 = vsel %vm116, %v113, %v117
    %v119 = vld [vmem:[#allocation2] sm:$0xff]
    %v120 = vld [vmem:[#allocation2 + $0x8] sm:$0xff]
    %v121 = vld [vmem:[#allocation2 + $0x10] sm:$0xff]
    %v122 = vld [vmem:[#allocation2 + $0x18] sm:$0xff]
    %v123 = vld [vmem:[#allocation2 + $0x20] sm:$0xff]
    %v124 = vld [vmem:[#allocation2 + $0x28] sm:$0xff]
    %v125 = vld [vmem:[#allocation2 + $0x30] sm:$0xff]
    %v126 = vld [vmem:[#allocation2 + $0x38] sm:$0xff]
    %v127 = vld [vmem:[#allocation2 + $0x40] sm:$0xff]
    %v128 = vld [vmem:[#allocation2 + $0x48] sm:$0xff]
    %v129 = vld [vmem:[#allocation2 + $0x50] sm:$0xff]
    %v130 = vld [vmem:[#allocation2 + $0x58] sm:$0xff]
    %v131 = vld [vmem:[#allocation2 + $0x60] sm:$0xff]
    %v132 = vld [vmem:[#allocation2 + $0x68] sm:$0xff]
    %v133 = vld [vmem:[#allocation2 + $0x70] sm:$0xff]
    %v134 = vld [vmem:[#allocation2 + $0x78] sm:$0xff]
    %v135 = vld [vmem:[%s3 + $0x1] sm:$0x1]
    %v136 = vlaneseq
    %v137 = vshrl.u32 %v136, 7
    %v138 = vsub.s32 0, %v137
    %v139 = vrot.slane %v135, %v138
    %140 = vmatprep.subr.mxu0 0.0
    %141 = vmatpush1.msra.mxu0 %v134
    %142 = vmatprep.subr.mxu0 0.0
    %143 = vmatpush1.msra.mxu0 %v133
    %144 = vmatprep.subr.mxu0 0.0
    %145 = vmatpush1.msra.mxu0 %v132
    %146 = vmatprep.subr.mxu0 0.0
    %147 = vmatpush1.msra.mxu0 %v131
    %148 = vmatprep.subr.mxu0 0.0
    %149 = vmatpush1.msra.mxu0 %v130
    %150 = vmatprep.subr.mxu0 0.0
    %151 = vmatpush1.msra.mxu0 %v129
    %152 = vmatprep.subr.mxu0 0.0
    %153 = vmatpush1.msra.mxu0 %v128
    %154 = vmatprep.subr.mxu0 0.0
    %155 = vmatpush1.msra.mxu0 %v127
    %156 = vmatprep.subr.mxu0 0.0
    %157 = vmatpush1.msra.mxu0 %v126
    %158 = vmatprep.subr.mxu0 0.0
    %159 = vmatpush1.msra.mxu0 %v125
    %160 = vmatprep.subr.mxu0 0.0
    %161 = vmatpush1.msra.mxu0 %v124
    %162 = vmatprep.subr.mxu0 0.0
    %163 = vmatpush1.msra.mxu0 %v123
    %164 = vmatprep.subr.mxu0 0.0
    %165 = vmatpush1.msra.mxu0 %v122
    %166 = vmatprep.subr.mxu0 0.0
    %167 = vmatpush1.msra.mxu0 %v121
    %168 = vmatprep.subr.mxu0 0.0
    %169 = vmatpush1.msra.mxu0 %v120
    %170 = vmatprep.subr.mxu0 0.0
    %171 = vmatpush1.msra.mxu0 %v119
    %172 = vmatprep.subr.mxu0 0.0
    %173 = vmatpush2.msra.mxu0 0.0
    %174 = vmatprep.subr.mxu0 0.0
    %175 = vmatpush2.msra.mxu0 0.0
    %176 = vmatprep.subr.mxu0 0.0
    %177 = vmatpush2.msra.mxu0 0.0
    %178 = vmatprep.subr.mxu0 0.0
    %179 = vmatpush2.msra.mxu0 0.0
    %180 = vmatprep.subr.mxu0 0.0
    %181 = vmatpush2.msra.mxu0 0.0
    %182 = vmatprep.subr.mxu0 0.0
    %183 = vmatpush2.msra.mxu0 0.0
    %184 = vmatprep.subr.mxu0 0.0
    %185 = vmatpush2.msra.mxu0 0.0
    %186 = vmatprep.subr.mxu0 0.0
    %187 = vmatpush2.msra.mxu0 0.0
    %188 = vmatprep.subr.mxu0 0.0
    %189 = vmatpush2.msra.mxu0 0.0
    %190 = vmatprep.subr.mxu0 0.0
    %191 = vmatpush2.msra.mxu0 0.0
    %192 = vmatprep.subr.mxu0 0.0
    %193 = vmatpush2.msra.mxu0 0.0
    %194 = vmatprep.subr.mxu0 0.0
    %195 = vmatpush2.msra.mxu0 0.0
    %196 = vmatprep.subr.mxu0 0.0
    %197 = vmatpush2.msra.mxu0 0.0
    %198 = vmatprep.subr.mxu0 0.0
    %199 = vmatpush2.msra.mxu0 0.0
    %200 = vmatprep.subr.mxu0 0.0
    %201 = vmatpush2.msra.mxu0 0.0
    %202 = vmatprep.subr.mxu0 0.0
    %203 = vmatpush2.msra.mxu0 0.0
    %204 = vmatprep.mubr.f32.mxu0 0.0
    %205 = vmatmul.mubr.f32.gmra.mxu0 %v118
    %v206 = vpop.f32.mrf.mxu0
    %v207 = vadd.f32 %v139, %v206
    %v208 = vpop.f32.mrf.mxu0
    %209 = vdwg.mxu0
    %v210 = vmin.f32 %v207, 0.0
    %v211 = vand.u32 2147483647, %v207
    %v212 = vsub.f32 0.0, %v211
    %v213 = vmul.f32 %v212, 1.442695
    %v214 = vpow.pop %v213
    %v215 = vadd.f32 %v214, 1.0
    %v216 = vlog2.pop %v215
    %v217 = vmul.f32 %v216, 0.6931472
    %v218 = vmul.f32 -0.5, %v214
    %v219 = vadd.f32 %v218, 1.0
    %v220 = vmul.f32 %v219, %v214
    %v221 = vand.u32 2147483647, %v214
    %vm222 = vcmp.lt.f32.partialorder %v221, 0.0004427343
    %v223 = vsel %vm222, %v220, %v217
    %v224 = vsub.f32 %v210, %v223
    %s225 = scalar_lea.vmem [#allocation2], 128
    %v226 = vld [vmem:[%s225] sm:$0xff]
    %v227 = vld [vmem:[%s225 + $0x8] sm:$0xff]
    %v228 = vld [vmem:[%s225 + $0x10] sm:$0xff]
    %v229 = vld [vmem:[%s225 + $0x18] sm:$0xff]
    %v230 = vld [vmem:[%s225 + $0x20] sm:$0xff]
    %v231 = vld [vmem:[%s225 + $0x28] sm:$0xff]
    %v232 = vld [vmem:[%s225 + $0x30] sm:$0xff]
    %v233 = vld [vmem:[%s225 + $0x38] sm:$0xff]
    %v234 = vld [vmem:[%s225 + $0x40] sm:$0xff]
    %v235 = vld [vmem:[%s225 + $0x48] sm:$0xff]
    %v236 = vld [vmem:[%s225 + $0x50] sm:$0xff]
    %v237 = vld [vmem:[%s225 + $0x58] sm:$0xff]
    %v238 = vld [vmem:[%s225 + $0x60] sm:$0xff]
    %v239 = vld [vmem:[%s225 + $0x68] sm:$0xff]
    %v240 = vld [vmem:[%s225 + $0x70] sm:$0xff]
    %v241 = vld [vmem:[%s225 + $0x78] sm:$0xff]
    %v242 = vld [vmem:[%s3 + $0x2] sm:$0x1]
    %v243 = vlaneseq
    %v244 = vshrl.u32 %v243, 7
    %v245 = vsub.s32 0, %v244
    %v246 = vrot.slane %v242, %v245
    %247 = vmatprep.subr.mxu0 0.0
    %248 = vmatpush1.msra.mxu0 %v241
    %249 = vmatprep.subr.mxu0 0.0
    %250 = vmatpush1.msra.mxu0 %v240
    %251 = vmatprep.subr.mxu0 0.0
    %252 = vmatpush1.msra.mxu0 %v239
    %253 = vmatprep.subr.mxu0 0.0
    %254 = vmatpush1.msra.mxu0 %v238
    %255 = vmatprep.subr.mxu0 0.0
    %256 = vmatpush1.msra.mxu0 %v237
    %257 = vmatprep.subr.mxu0 0.0
    %258 = vmatpush1.msra.mxu0 %v236
    %259 = vmatprep.subr.mxu0 0.0
    %260 = vmatpush1.msra.mxu0 %v235
    %261 = vmatprep.subr.mxu0 0.0
    %262 = vmatpush1.msra.mxu0 %v234
    %263 = vmatprep.subr.mxu0 0.0
    %264 = vmatpush1.msra.mxu0 %v233
    %265 = vmatprep.subr.mxu0 0.0
    %266 = vmatpush1.msra.mxu0 %v232
    %267 = vmatprep.subr.mxu0 0.0
    %268 = vmatpush1.msra.mxu0 %v231
    %269 = vmatprep.subr.mxu0 0.0
    %270 = vmatpush1.msra.mxu0 %v230
    %271 = vmatprep.subr.mxu0 0.0
    %272 = vmatpush1.msra.mxu0 %v229
    %273 = vmatprep.subr.mxu0 0.0
    %274 = vmatpush1.msra.mxu0 %v228
    %275 = vmatprep.subr.mxu0 0.0
    %276 = vmatpush1.msra.mxu0 %v227
    %277 = vmatprep.subr.mxu0 0.0
    %278 = vmatpush1.msra.mxu0 %v226
    %279 = vmatprep.subr.mxu0 0.0
    %280 = vmatpush2.msra.mxu0 0.0
    %281 = vmatprep.subr.mxu0 0.0
    %282 = vmatpush2.msra.mxu0 0.0
    %283 = vmatprep.subr.mxu0 0.0
    %284 = vmatpush2.msra.mxu0 0.0
    %285 = vmatprep.subr.mxu0 0.0
    %286 = vmatpush2.msra.mxu0 0.0
    %287 = vmatprep.subr.mxu0 0.0
    %288 = vmatpush2.msra.mxu0 0.0
    %289 = vmatprep.subr.mxu0 0.0
    %290 = vmatpush2.msra.mxu0 0.0
    %291 = vmatprep.subr.mxu0 0.0
    %292 = vmatpush2.msra.mxu0 0.0
    %293 = vmatprep.subr.mxu0 0.0
    %294 = vmatpush2.msra.mxu0 0.0
    %295 = vmatprep.subr.mxu0 0.0
    %296 = vmatpush2.msra.mxu0 0.0
    %297 = vmatprep.subr.mxu0 0.0
    %298 = vmatpush2.msra.mxu0 0.0
    %299 = vmatprep.subr.mxu0 0.0
    %300 = vmatpush2.msra.mxu0 0.0
    %301 = vmatprep.subr.mxu0 0.0
    %302 = vmatpush2.msra.mxu0 0.0
    %303 = vmatprep.subr.mxu0 0.0
    %304 = vmatpush2.msra.mxu0 0.0
    %305 = vmatprep.subr.mxu0 0.0
    %306 = vmatpush2.msra.mxu0 0.0
    %307 = vmatprep.subr.mxu0 0.0
    %308 = vmatpush2.msra.mxu0 0.0
    %309 = vmatprep.subr.mxu0 0.0
    %310 = vmatpush2.msra.mxu0 0.0
    %311 = vmatprep.mubr.f32.mxu0 0.0
    %312 = vmatmul.mubr.f32.gmra.mxu0 %v224
    %v313 = vpop.f32.mrf.mxu0
    %v314 = vadd.f32 %v246, %v313
    %v315 = vpop.f32.mrf.mxu0
    %316 = vdwg.mxu0
    %vm317 = vcmp.gt.f32.partialorder %v314, 0.0
    %v318 = vmul.f32 %v314, 0.01
    %v319 = vsel %vm317, %v314, %v318
    %s320 = scalar_lea.vmem [#allocation2], 256
    %v321 = vld [vmem:[%s320] sm:$0xff]
    %v322 = vld [vmem:[%s320 + $0x8] sm:$0xff]
    %v323 = vld [vmem:[%s320 + $0x10] sm:$0xff]
    %v324 = vld [vmem:[%s320 + $0x18] sm:$0xff]
    %v325 = vld [vmem:[%s320 + $0x20] sm:$0xff]
    %v326 = vld [vmem:[%s320 + $0x28] sm:$0xff]
    %v327 = vld [vmem:[%s320 + $0x30] sm:$0xff]
    %v328 = vld [vmem:[%s320 + $0x38] sm:$0xff]
    %v329 = vld [vmem:[%s320 + $0x40] sm:$0xff]
    %v330 = vld [vmem:[%s320 + $0x48] sm:$0xff]
    %v331 = vld [vmem:[%s320 + $0x50] sm:$0xff]
    %v332 = vld [vmem:[%s320 + $0x58] sm:$0xff]
    %v333 = vld [vmem:[%s320 + $0x60] sm:$0xff]
    %v334 = vld [vmem:[%s320 + $0x68] sm:$0xff]
    %v335 = vld [vmem:[%s320 + $0x70] sm:$0xff]
    %v336 = vld [vmem:[%s320 + $0x78] sm:$0xff]
    %v337 = vld [vmem:[%s3 + $0x3] sm:$0x1]
    %v338 = vlaneseq
    %v339 = vshrl.u32 %v338, 7
    %v340 = vsub.s32 0, %v339
    %v341 = vrot.slane %v337, %v340
    %342 = vmatprep.subr.mxu0 0.0
    %343 = vmatpush1.msra.mxu0 %v336
    %344 = vmatprep.subr.mxu0 0.0
    %345 = vmatpush1.msra.mxu0 %v335
    %346 = vmatprep.subr.mxu0 0.0
    %347 = vmatpush1.msra.mxu0 %v334
    %348 = vmatprep.subr.mxu0 0.0
    %349 = vmatpush1.msra.mxu0 %v333
    %350 = vmatprep.subr.mxu0 0.0
    %351 = vmatpush1.msra.mxu0 %v332
    %352 = vmatprep.subr.mxu0 0.0
    %353 = vmatpush1.msra.mxu0 %v331
    %354 = vmatprep.subr.mxu0 0.0
    %355 = vmatpush1.msra.mxu0 %v330
    %356 = vmatprep.subr.mxu0 0.0
    %357 = vmatpush1.msra.mxu0 %v329
    %358 = vmatprep.subr.mxu0 0.0
    %359 = vmatpush1.msra.mxu0 %v328
    %360 = vmatprep.subr.mxu0 0.0
    %361 = vmatpush1.msra.mxu0 %v327
    %362 = vmatprep.subr.mxu0 0.0
    %363 = vmatpush1.msra.mxu0 %v326
    %364 = vmatprep.subr.mxu0 0.0
    %365 = vmatpush1.msra.mxu0 %v325
    %366 = vmatprep.subr.mxu0 0.0
    %367 = vmatpush1.msra.mxu0 %v324
    %368 = vmatprep.subr.mxu0 0.0
    %369 = vmatpush1.msra.mxu0 %v323
    %370 = vmatprep.subr.mxu0 0.0
    %371 = vmatpush1.msra.mxu0 %v322
    %372 = vmatprep.subr.mxu0 0.0
    %373 = vmatpush1.msra.mxu0 %v321
    %374 = vmatprep.subr.mxu0 0.0
    %375 = vmatpush2.msra.mxu0 0.0
    %376 = vmatprep.subr.mxu0 0.0
    %377 = vmatpush2.msra.mxu0 0.0
    %378 = vmatprep.subr.mxu0 0.0
    %379 = vmatpush2.msra.mxu0 0.0
    %380 = vmatprep.subr.mxu0 0.0
    %381 = vmatpush2.msra.mxu0 0.0
    %382 = vmatprep.subr.mxu0 0.0
    %383 = vmatpush2.msra.mxu0 0.0
    %384 = vmatprep.subr.mxu0 0.0
    %385 = vmatpush2.msra.mxu0 0.0
    %386 = vmatprep.subr.mxu0 0.0
    %387 = vmatpush2.msra.mxu0 0.0
    %388 = vmatprep.subr.mxu0 0.0
    %389 = vmatpush2.msra.mxu0 0.0
    %390 = vmatprep.subr.mxu0 0.0
    %391 = vmatpush2.msra.mxu0 0.0
    %392 = vmatprep.subr.mxu0 0.0
    %393 = vmatpush2.msra.mxu0 0.0
    %394 = vmatprep.subr.mxu0 0.0
    %395 = vmatpush2.msra.mxu0 0.0
    %396 = vmatprep.subr.mxu0 0.0
    %397 = vmatpush2.msra.mxu0 0.0
    %398 = vmatprep.subr.mxu0 0.0
    %399 = vmatpush2.msra.mxu0 0.0
    %400 = vmatprep.subr.mxu0 0.0
    %401 = vmatpush2.msra.mxu0 0.0
    %402 = vmatprep.subr.mxu0 0.0
    %403 = vmatpush2.msra.mxu0 0.0
    %404 = vmatprep.subr.mxu0 0.0
    %405 = vmatpush2.msra.mxu0 0.0
    %406 = vmatprep.mubr.f32.mxu0 0.0
    %407 = vmatmul.mubr.f32.gmra.mxu0 %v319
    %v408 = vpop.f32.mrf.mxu0
    %v409 = vadd.f32 %v341, %v408
    %v410 = vpop.f32.mrf.mxu0
    %411 = vdwg.mxu0
    %412 = vst [vmem:[%s4] sm:$0xff] %v409
    // Predicated region
    $region22: #{new_model_forward.1} parent=1 // pred_check
      _
    $region23: #{new_model_forward.1} parent=1 // pred_check_branch
      %414 = sbr.rel (0) target = $region25
    $region24: #{new_model_forward.1} parent=1 // pred_region
      _
    $region25: #{new_model_forward.1} parent=1 // pred_fallthru
      _
    // Predicated region
    $region26: #{new_model_forward.1} parent=1 // pred_check
      _
    $region27: #{new_model_forward.1} parent=1 // pred_check_branch
      %416 = sbr.rel (0) target = $region29
    $region28: #{new_model_forward.1} parent=1 // pred_region
      _
    $region29: #{new_model_forward.1} parent=1 // pred_fallthru
      _
    %417 = vsyncpa [#allocation3], 1

</llo_original>
